<compile_context>
chip_gen: v7x
topology: tpu7x:2x2x1
jax: 0.10.0
libtpu: 0.0.40
codegen_flags: <defaults>
</compile_context>

<pallas_src>
import functools

import jax
import jax.numpy as jnp
from jax.experimental import pallas as pl
from jax.experimental.pallas import tpu as pltpu

_LANE = 128
_SUBLANE_BF16 = 16           # bf16 packs 2 rows / sublane -> 16-row granularity
_NEG_INF = -1e30


def _round_up(n, m):
    return ((n + m - 1) // m) * m


# ---------------------------------------------------------------------------
# Kernel
# ---------------------------------------------------------------------------
def _ensemble_fused_kernel(x_ref, w1_ref, b1_ref, w2_ref, b2_ref, out_ref,
                           *, num_members, h_pad, k_pad):
    """One batch tile, all ensemble members.

    x_ref  : (TILE_B, d_pad)          bf16
    w1_ref : (d_pad, M*h_pad)         bf16   (members concatenated along N)
    b1_ref : (1, M*h_pad)             f32
    w2_ref : (M, h_pad, k_pad)        bf16
    b2_ref : (M, 1, k_pad)            f32    (padded class cols = -1e30)
    out_ref: (M, TILE_B, 2*k_pad)     out_dtype   [ logits | probs ]
    """
    x = x_ref[...]                                                 # bf16
    # First matmul for ALL members at once -> fills the wide MXU.
    h = jnp.dot(x, w1_ref[...], preferred_element_type=jnp.float32)
    h = jnp.maximum(h + b1_ref[...], 0.0)                          # f32 epilogue
    hb = h.astype(jnp.bfloat16)

    # Second matmul + softmax per member (M is small; static unroll).
    for m in range(num_members):
        hm = hb[:, m * h_pad:(m + 1) * h_pad]                      # static slice
        logits = jnp.dot(hm, w2_ref[m],
                         preferred_element_type=jnp.float32) + b2_ref[m]
        # transform_logits(): numerically stable softmax. Padded class columns
        # already carry a -1e30 bias -> exp underflows to 0, no pollution.
        mx = jnp.max(logits, axis=-1, keepdims=True)
        e = jnp.exp(logits - mx)
        denom = jnp.sum(e, axis=-1, keepdims=True)
        probs = e * pl.reciprocal(denom, approx=True)              # EUP vrcp

        # Lane-dense, 128-aligned stores: [ logits | probs ].
        out_ref[m, :, :k_pad] = logits.astype(out_ref.dtype)
        out_ref[m, :, k_pad:] = probs.astype(out_ref.dtype)


# ---------------------------------------------------------------------------
# VMEM budgeting / tile selection (generation-aware)
# ---------------------------------------------------------------------------
def _vmem_cap_bytes():
    phys = None
    try:
        info = pltpu.get_tpu_info()
        phys = int(getattr(info, "vmem_capacity_bytes", 0)) or None
    except Exception:
        phys = None
    if not phys:
        phys = 64 << 20          # conservative: assume v7x-class 64 MiB VMEM
    # Leave ~1/8 headroom for the compiler; never ask for more than ~100 MiB
    # even on 128 MiB parts (v5e/v6e).
    return int(min(phys - phys // 8, 100 << 20))


def _vmem_need_bytes(tile_b, d_pad, h_pad, k_pad, num_members, out_bytes):
    mh = num_members * h_pad
    return int(
        2 * tile_b * d_pad * 2                         # x tile, dbl-buffered bf16
        + 2 * d_pad * mh * 2                           # w1 slab (2 bufs counted)
        + 2 * mh * 4                                   # b1
        + 2 * num_members * h_pad * k_pad * 2          # w2
        + 2 * num_members * k_pad * 4                  # b2
        + 2 * num_members * tile_b * 2 * k_pad * out_bytes  # out tile, dbl-buf
        + tile_b * mh * 4                              # hidden acts f32
        + tile_b * mh * 2                              # hidden acts bf16
        + 4 * tile_b * k_pad * 4                       # softmax temporaries
    )


def _choose_tile_b(B, num_members, d_pad, h_pad, k_pad, out_bytes, cap,
                   requested=None):
    upper = max(_SUBLANE_BF16, _round_up(B, _SUBLANE_BF16))
    if requested is not None:
        upper = min(upper, max(_SUBLANE_BF16,
                               _round_up(int(requested), _SUBLANE_BF16)))
    budget = int(cap * 0.85)
    cands = [upper] + [t for t in (2048, 1024, 512, 256, 128, 64, 32, 16)
                       if t < upper]
    for t in cands:
        if _vmem_need_bytes(t, d_pad, h_pad, k_pad,
                            num_members, out_bytes) <= budget:
            return t
    return _SUBLANE_BF16


# ---------------------------------------------------------------------------
# Wrappers
# ---------------------------------------------------------------------------
def ensemble_forward(x, w1, b1, w2, b2, *, tile_b=None,
                     out_dtype=jnp.bfloat16):
    """Fused forward + transform_logits for a whole stacked ensemble.

    x  : (B, D_in)
    w1 : (M, D_in, H), b1 : (M, H)
    w2 : (M, H, K),    b2 : (M, K)
    returns (logits (M, B, K), probs (M, B, K)) in `out_dtype`.
    """
    B, D = x.shape
    M, _, H = w1.shape
    K = w2.shape[2]

    d_pad = _round_up(D, _LANE)
    h_pad = _round_up(H, _LANE)
    k_pad = _round_up(K, _LANE)
    out_bytes = jnp.dtype(out_dtype).itemsize

    cap = _vmem_cap_bytes()
    tb = _choose_tile_b(B, M, d_pad, h_pad, k_pad, out_bytes, cap,
                        requested=tile_b)
    b_pad = _round_up(B, tb)
    need = _vmem_need_bytes(tb, d_pad, h_pad, k_pad, M, out_bytes)
    vmem_limit = int(min(cap, max(int(1.5 * need), 32 << 20)))

    # --- host-side prep: cast to bf16 FIRST, then pad (no padded f32 copies) -
    x_p = jnp.pad(x.astype(jnp.bfloat16),
                  ((0, b_pad - B), (0, d_pad - D)))
    w1_p = jnp.pad(w1.astype(jnp.bfloat16),
                   ((0, 0), (0, d_pad - D), (0, h_pad - H)))
    # (M, d_pad, h_pad) -> (d_pad, M*h_pad): member blocks concatenated along N.
    w1_all = jnp.transpose(w1_p, (1, 0, 2)).reshape(d_pad, M * h_pad)
    b1_all = jnp.pad(b1.astype(jnp.float32),
                     ((0, 0), (0, h_pad - H))).reshape(1, M * h_pad)
    w2_p = jnp.pad(w2.astype(jnp.bfloat16),
                   ((0, 0), (0, h_pad - H), (0, k_pad - K)))
    # Bake class masking into the bias: padded class columns get -1e30.
    b2_p = jnp.pad(b2.astype(jnp.float32).reshape(M, 1, K),
                   ((0, 0), (0, 0), (0, k_pad - K)),
                   constant_values=_NEG_INF)

    grid = (b_pad // tb,)
    kernel = functools.partial(_ensemble_fused_kernel,
                               num_members=M, h_pad=h_pad, k_pad=k_pad)

    grid_spec = pltpu.PrefetchScalarGridSpec(
        num_scalar_prefetch=0,
        grid=grid,
        in_specs=[
            pl.BlockSpec((tb, d_pad), lambda i: (i, 0)),          # x: batch-tiled
            pl.BlockSpec((d_pad, M * h_pad), lambda i: (0, 0)),   # weights stay
            pl.BlockSpec((1, M * h_pad), lambda i: (0, 0)),       #   VMEM-resident
            pl.BlockSpec((M, h_pad, k_pad), lambda i: (0, 0, 0)),
            pl.BlockSpec((M, 1, k_pad), lambda i: (0, 0, 0)),
        ],
        out_specs=pl.BlockSpec((M, tb, 2 * k_pad), lambda i: (0, i, 0)),
    )

    out = pl.pallas_call(
        kernel,
        out_shape=jax.ShapeDtypeStruct((M, b_pad, 2 * k_pad), out_dtype),
        grid_spec=grid_spec,
        compiler_params=pltpu.CompilerParams(
            # Single batch-tile axis is the parallel one -> balanced 2-TC split
            # on v7x; harmless on single-TC v5e/v6e.
            dimension_semantics=("parallel",),
            vmem_limit_bytes=vmem_limit,
        ),
    )(x_p, w1_all, b1_all, w2_p, b2_p)

    logits = out[:, :B, :K]
    probs = out[:, :B, k_pad:k_pad + K]
    return logits, probs


def ensemble_member_forward(x, w1, b1, w2, b2, *, tile_b=None,
                            out_dtype=jnp.bfloat16):
    """Fused forward + transform_logits for a single ensemble member.

    x : (B, D_in); w1 : (D_in, H), b1 : (H,); w2 : (H, K), b2 : (K,)
    returns (logits (B, K), probs (B, K)) in `out_dtype`.
    """
    logits, probs = ensemble_forward(
        x, w1[None], jnp.reshape(b1, (1, -1)),
        w2[None], jnp.reshape(b2, (1, -1)),
        tile_b=tile_b, out_dtype=out_dtype)
    return logits[0], probs[0]


# ---------------------------------------------------------------------------
# Reference + test
# ---------------------------------------------------------------------------
def _reference_forward(x, w1, b1, w2, b2):
    h = jnp.maximum(x @ w1 + jnp.reshape(b1, (1, -1)), 0.0)
    logits = h @ w2 + jnp.reshape(b2, (1, -1))
    probs = jax.nn.softmax(logits, axis=-1)
    return logits, probs


if __name__ == "__main__":
    # Small deterministic example: batch=24, input dim=32, hidden=32,
    # output_size (num classes K)=8, ensemble of M=4 members.
    B, D_IN, HID, K, M = 24, 32, 32, 8, 4

    key = jax.random.PRNGKey(0)
    kx, k1, k2, k3, k4 = jax.random.split(key, 5)
    x = jax.random.normal(kx, (B, D_IN), dtype=jnp.float32)
    w1 = jax.random.normal(k1, (M, D_IN, HID), dtype=jnp.float32) * 0.1
    b1 = jax.random.normal(k2, (M, HID), dtype=jnp.float32) * 0.01
    w2 = jax.random.normal(k3, (M, HID, K), dtype=jnp.float32) * 0.1
    b2 = jax.random.normal(k4, (M, K), dtype=jnp.float32) * 0.01

    # Single member; small tile_b so the test exercises a multi-step grid.
    logits, probs = ensemble_member_forward(x, w1[0], b1[0], w2[0], b2[0],
                                            tile_b=16)
    jax.block_until_ready((logits, probs))

    ref_logits, ref_probs = _reference_forward(x, w1[0], b1[0], w2[0], b2[0])
    assert logits.shape == (B, K) and probs.shape == (B, K)
    lf = logits.astype(jnp.float32)
    pf = probs.astype(jnp.float32)
    assert jnp.allclose(lf, ref_logits, atol=5e-2, rtol=5e-2)
    assert jnp.allclose(pf, ref_probs, atol=3e-2, rtol=5e-2)
    # approx-reciprocal + bf16 output -> rows sum to 1 only approximately.
    assert jnp.allclose(jnp.sum(pf, axis=-1), 1.0, atol=2e-2)

    # Whole ensemble in one pallas_call (weights resident, x read once).
    e_logits, e_probs = ensemble_forward(x, w1, b1, w2, b2, tile_b=16)
    jax.block_until_ready((e_logits, e_probs))
    assert e_logits.shape == (M, B, K) and e_probs.shape == (M, B, K)
    for m in range(M):
        rl, rp = _reference_forward(x, w1[m], b1[m], w2[m], b2[m])
        elf = e_logits[m].astype(jnp.float32)
        epf = e_probs[m].astype(jnp.float32)
        assert jnp.allclose(elf, rl, atol=5e-2, rtol=5e-2)
        assert jnp.allclose(epf, rp, atol=3e-2, rtol=5e-2)
        assert jnp.allclose(jnp.sum(epf, axis=-1), 1.0, atol=2e-2)

    # Default (auto) tile selection path also runs.
    a_logits, a_probs = ensemble_forward(x, w1, b1, w2, b2)
    jax.block_until_ready((a_logits, a_probs))
    assert a_logits.shape == (M, B, K) and a_probs.shape == (M, B, K)

    print("KERNEL_OK")
</pallas_src>

<mosaic_0001>
module attributes {stable_mosaic.version = 11 : i64} {
  func.func @_ensemble_fused_kernel(%arg0: i32, %arg1: memref<16x128xbf16, #tpu.memory_space<vmem>>, %arg2: memref<128x128xbf16, #tpu.memory_space<vmem>>, %arg3: memref<1x128xf32, #tpu.memory_space<vmem>>, %arg4: memref<1x128x128xbf16, #tpu.memory_space<vmem>>, %arg5: memref<1x1x128xf32, #tpu.memory_space<vmem>>, %arg6: memref<1x16x256xbf16, #tpu.memory_space<vmem>>) attributes {dimension_semantics = [#tpu.dimension_semantics<parallel>], iteration_bounds = array<i64: 2>, scalar_prefetch = 0 : i64, scratch_operands = 0 : i64, tpu.core_type = #tpu.core_type<tc>, window_params = [{transform_indices = @transform_0, window_bounds = array<i64: 16, 128>}, {pipeline_mode = #tpu.pipeline_mode<synchronous>, transform_indices = @transform_1, window_bounds = array<i64: 128, 128>}, {pipeline_mode = #tpu.pipeline_mode<synchronous>, transform_indices = @transform_2, window_bounds = array<i64: 1, 128>}, {pipeline_mode = #tpu.pipeline_mode<synchronous>, transform_indices = @transform_3, window_bounds = array<i64: 1, 128, 128>}, {pipeline_mode = #tpu.pipeline_mode<synchronous>, transform_indices = @transform_4, window_bounds = array<i64: 1, 1, 128>}, {transform_indices = @transform_5, window_bounds = array<i64: 1, 16, 256>}]} {
    %c0 = arith.constant 0 : index
    %c0_0 = arith.constant 0 : index
    %0 = vector.load %arg1[%c0, %c0_0] : memref<16x128xbf16, #tpu.memory_space<vmem>>, vector<16x128xbf16>
    %c0_1 = arith.constant 0 : index
    %c0_2 = arith.constant 0 : index
    %1 = vector.load %arg2[%c0_1, %c0_2] : memref<128x128xbf16, #tpu.memory_space<vmem>>, vector<128x128xbf16>
    %cst = arith.constant dense<0.000000e+00> : vector<16x128xf32>
    %2 = tpu.matmul %0, %1, %cst {dimension_numbers = #tpu.dot_dimension_numbers<[1], [0], [0], [1], [0, 0, 1, 1], [], []>} : vector<16x128xbf16>, vector<128x128xbf16>, vector<16x128xf32> -> vector<16x128xf32>
    %c0_3 = arith.constant 0 : index
    %c0_4 = arith.constant 0 : index
    %3 = vector.load %arg3[%c0_3, %c0_4] : memref<1x128xf32, #tpu.memory_space<vmem>>, vector<1x128xf32>
    %4 = vector.broadcast %3 : vector<1x128xf32> to vector<16x128xf32>
    %5 = arith.addf %2, %4 : vector<16x128xf32>
    %cst_5 = arith.constant 0.000000e+00 : f32
    %6 = vector.broadcast %cst_5 : f32 to vector<16x128xf32>
    %7 = arith.maximumf %5, %6 : vector<16x128xf32>
    %8 = arith.truncf %7 : vector<16x128xf32> to vector<16x128xbf16>
    %c0_6 = arith.constant 0 : index
    %c0_7 = arith.constant 0 : index
    %c0_8 = arith.constant 0 : index
    %9 = vector.load %arg4[%c0_6, %c0_7, %c0_8] : memref<1x128x128xbf16, #tpu.memory_space<vmem>>, vector<1x128x128xbf16>
    %10 = vector.shape_cast %9 : vector<1x128x128xbf16> to vector<128x128xbf16>
    %cst_9 = arith.constant dense<0.000000e+00> : vector<16x128xf32>
    %11 = tpu.matmul %8, %10, %cst_9 {dimension_numbers = #tpu.dot_dimension_numbers<[1], [0], [0], [1], [0, 0, 1, 1], [], []>} : vector<16x128xbf16>, vector<128x128xbf16>, vector<16x128xf32> -> vector<16x128xf32>
    %c0_10 = arith.constant 0 : index
    %c0_11 = arith.constant 0 : index
    %c0_12 = arith.constant 0 : index
    %12 = vector.load %arg5[%c0_10, %c0_11, %c0_12] : memref<1x1x128xf32, #tpu.memory_space<vmem>>, vector<1x1x128xf32>
    %13 = vector.shape_cast %12 : vector<1x1x128xf32> to vector<1x128xf32>
    %14 = vector.broadcast %13 : vector<1x128xf32> to vector<16x128xf32>
    %15 = arith.addf %11, %14 : vector<16x128xf32>
    %cst_13 = arith.constant dense<0xFF800000> : vector<16xf32>
    %16 = vector.multi_reduction <maximumf>, %15, %cst_13 [1] : vector<16x128xf32> to vector<16xf32>
    %17 = vector.shape_cast %16 : vector<16xf32> to vector<16x1xf32>
    %18 = vector.broadcast %17 : vector<16x1xf32> to vector<16x128xf32>
    %19 = arith.subf %15, %18 : vector<16x128xf32>
    %20 = math.exp %19 : vector<16x128xf32>
    %cst_14 = arith.constant dense<0.000000e+00> : vector<16xf32>
    %21 = vector.multi_reduction <add>, %20, %cst_14 [1] : vector<16x128xf32> to vector<16xf32>
    %22 = vector.shape_cast %21 : vector<16xf32> to vector<16x1xf32>
    %23 = tpu.reciprocal %22 {approx = true} : vector<16x1xf32> -> vector<16x1xf32>
    %24 = vector.broadcast %23 : vector<16x1xf32> to vector<16x128xf32>
    %25 = arith.mulf %20, %24 : vector<16x128xf32>
    %26 = arith.truncf %15 : vector<16x128xf32> to vector<16x128xbf16>
    %c0_15 = arith.constant 0 : index
    %c0_16 = arith.constant 0 : index
    %c0_17 = arith.constant 0 : index
    %27 = vector.load %arg6[%c0_15, %c0_16, %c0_17] : memref<1x16x256xbf16, #tpu.memory_space<vmem>>, vector<1x16x128xbf16>
    %28 = vector.shape_cast %27 : vector<1x16x128xbf16> to vector<16x128xbf16>
    %29 = vector.shape_cast %26 : vector<16x128xbf16> to vector<1x16x128xbf16>
    tpu.vector_store %arg6[%c0_15, %c0_16, %c0_17], %29 {strides = array<i32>} : memref<1x16x256xbf16, #tpu.memory_space<vmem>>, vector<1x16x128xbf16>,
    %30 = arith.truncf %25 : vector<16x128xf32> to vector<16x128xbf16>
    %c0_18 = arith.constant 0 : index
    %c0_19 = arith.constant 0 : index
    %c128 = arith.constant 128 : index
    %31 = vector.load %arg6[%c0_18, %c0_19, %c128] : memref<1x16x256xbf16, #tpu.memory_space<vmem>>, vector<1x16x128xbf16>
    %32 = vector.shape_cast %31 : vector<1x16x128xbf16> to vector<16x128xbf16>
    %33 = vector.shape_cast %30 : vector<16x128xbf16> to vector<1x16x128xbf16>
    tpu.vector_store %arg6[%c0_18, %c0_19, %c128], %33 {strides = array<i32>} : memref<1x16x256xbf16, #tpu.memory_space<vmem>>, vector<1x16x128xbf16>,
    return
  }
  func.func @transform_0(%arg0: i32) -> (i32, i32) {
    %c0_i32 = arith.constant 0 : i32
    %c0_i32_0 = arith.constant 0 : i32
    return %arg0, %c0_i32 : i32, i32
  }
  func.func @transform_1(%arg0: i32) -> (i32, i32) {
    %c0_i32 = arith.constant 0 : i32
    %c0_i32_0 = arith.constant 0 : i32
    %c0_i32_1 = arith.constant 0 : i32
    return %c0_i32, %c0_i32_0 : i32, i32
  }
  func.func @transform_2(%arg0: i32) -> (i32, i32) {
    %c0_i32 = arith.constant 0 : i32
    %c0_i32_0 = arith.constant 0 : i32
    %c0_i32_1 = arith.constant 0 : i32
    return %c0_i32, %c0_i32_0 : i32, i32
  }
  func.func @transform_3(%arg0: i32) -> (i32, i32, i32) {
    %c0_i32 = arith.constant 0 : i32
    %c0_i32_0 = arith.constant 0 : i32
    %c0_i32_1 = arith.constant 0 : i32
    %c0_i32_2 = arith.constant 0 : i32
    return %c0_i32, %c0_i32_0, %c0_i32_1 : i32, i32, i32
  }
  func.func @transform_4(%arg0: i32) -> (i32, i32, i32) {
    %c0_i32 = arith.constant 0 : i32
    %c0_i32_0 = arith.constant 0 : i32
    %c0_i32_1 = arith.constant 0 : i32
    %c0_i32_2 = arith.constant 0 : i32
    return %c0_i32, %c0_i32_0, %c0_i32_1 : i32, i32, i32
  }
  func.func @transform_5(%arg0: i32) -> (i32, i32, i32) {
    %c0_i32 = arith.constant 0 : i32
    %c0_i32_0 = arith.constant 0 : i32
    %c0_i32_1 = arith.constant 0 : i32
    return %c0_i32, %arg0, %c0_i32_0 : i32, i32, i32
  }
}

</mosaic_0001>

<llo_original>
// kernel: tpu_custom_call.1
$region0: #{tpu_custom_call.1}
  #allocation0 [shape = 'u32[]', space=smem, size = 0x4, offset = 0x4, fixed_abs, tag = 'smem constant byte address 0x4 - core index']
  #allocation1 [shape = 'u32[144,128]{1,0:T(1,128)}', space=vmem, size = 0x12000, scoped, tag = 'internal scratch']
  %s0 = inlined_call_operand.hbm [shape: bf16[32,128], index: 0, kind: input, shape index: {}]
  %s1 = inlined_call_operand.hbm [shape: bf16[128,128], index: 1, kind: input, shape index: {}]
  %s2 = inlined_call_operand.vmem [shape: f32[1,128], index: 2, kind: input, shape index: {}]
  %s3 = inlined_call_operand.hbm [shape: bf16[1,128,128], index: 3, kind: input, shape index: {}]
  %s4 = inlined_call_operand.vmem [shape: f32[1,1,128], index: 4, kind: input, shape index: {}]
  %s5 = inlined_call_operand.hbm [shape: bf16[1,32,256], index: 5, kind: output, shape index: {}]
  %s6 = sld [smem:[#allocation0]]
  $region65: #{tpu_custom_call.1} parent=0
    _
  %s8 = ssub.s32 1, %s6
  %s9 = scalar_select 0, %s8, %s6
  $region1: #{tpu_custom_call.1} parent=0
    #allocation2 [shape = 'u8[8192]{0}', space=vmem, size = 0x2000, scoped, tag = 'input window, operand 0']
    #allocation3 [shape = 's32[2]{0}', space=sflag, size = 0x8, scoped, tag = 'scoped memory for tpu_custom_call.1']
    #allocation4 [shape = 's32[2]{0}', space=sflag, size = 0x8, scoped, tag = 'scoped memory for tpu_custom_call.1']
    #allocation5 [shape = 'u8[32768]{0}', space=vmem, size = 0x8000, scoped, tag = 'input window, operand 1, single buffered']
    #allocation6 [shape = 's32[1]{0}', space=sflag, size = 0x4, scoped, tag = 'scoped memory for tpu_custom_call.1']
    #allocation7 [shape = 'u8[32768]{0}', space=vmem, size = 0x8000, scoped, tag = 'input window, operand 3, single buffered']
    #allocation8 [shape = 'u8[16384]{0}', space=vmem, size = 0x4000, scoped, tag = 'output window, operand 0']
    %10 = vsyncpa [#allocation3], 0
    %s11 = scalar_lea.sflag [#allocation3], 1
    %12 = vsyncpa %s11, 0
    %13 = vsyncpa [#allocation6], 0
    %14 = vsyncpa [#allocation4], 0
    %s15 = scalar_lea.sflag [#allocation4], 1
    %16 = vsyncpa %s15, 0
    loop: start=0, step=1, limit=4
    $region2: #{tpu_custom_call.1} parent=1 // loop_pre_header
      _
    $region3: #{tpu_custom_call.1} parent=1 // loop_header
      %s18 = sphi 0, %s22
      %p19 = scmp.ge.s32.totalorder %s18, 4
      %s28 = sphi 0, %s30
      %s31 = sphi 0, %s28
      %s32 = sphi 0, %s31
      %s48 = sphi 0, %s32
      %s52 = sphi 0, %s52
      %s54 = sphi 0, %s52
      %s55 = sphi 0, %s54
      %s69 = sphi 0, %s55
      %s73 = sphi 0, %s73
      %s75 = sphi 0, %s73
      %s76 = sphi 0, %s75
      %s90 = sphi 0, %s76
      %s94 = sphi 0, %s94
      %s96 = sphi 0, %s94
      %s97 = sphi 0, %s96
      %s111 = sphi 0, %s97
      %s115 = sphi 0, %s115
      %s117 = sphi 0, %s115
      %s118 = sphi 0, %s117
      %s132 = sphi 0, %s118
      %s138 = sphi 0, %s140
      %s141 = sphi 0, %s138
      %s142 = sphi 0, %s141
      %s158 = sphi 0, %s142
    $region4: #{tpu_custom_call.1} parent=1 // loop_header_branch
      %21 = sbr.rel (%p19) target = $region8
    $region5: #{tpu_custom_call.1} parent=1 // loop_body
      %s23 = ssub.s32 %s18, 1
      %s24 = ssub.s32 %s18, 2
      %s25 = sadd.s32 %s18, 1
      %s26 = ssub.s32 %s18, %s25
      %p27 = scmp.eq.s32.totalorder %s26, 0
      %s29 = sadd.s32 %s28, 1
      %s30 = scalar_select %p27, %s28, %s29
      %p33 = pneg %p27
      %p34 = scmp.eq.s32.totalorder %s18, 1
      %p35 = por %p33, %p34
      %p36 = scmp.ne.s32.totalorder %s28, %s31
      %p37 = scmp.eq.s32.totalorder %s18, 0
      %p38 = por %p36, %p37
      %p39 = scmp.ne.s32.totalorder %s28, %s31
      %p40 = scmp.eq.s32.totalorder %s23, 1
      %p41 = por %p39, %p40
      %p42 = scmp.ne.s32.totalorder %s31, %s32
      %p43 = scmp.eq.s32.totalorder %s23, 0
      %p44 = por %p42, %p43
      %p45 = scmp.ne.s32.totalorder %s31, %s32
      %p46 = scmp.eq.s32.totalorder %s24, 1
      %p47 = por %p45, %p46
      %p49 = scmp.ne.s32.totalorder %s32, %s48
      %p50 = scmp.eq.s32.totalorder %s24, 0
      %p51 = por %p49, %p50
      %s53 = sadd.s32 %s52, 1
      %p56 = scmp.eq.s32.totalorder %s18, 1
      %p57 = scmp.ne.s32.totalorder %s52, %s54
      %p58 = scmp.eq.s32.totalorder %s18, 0
      %p59 = por %p57, %p58
      %p60 = scmp.ne.s32.totalorder %s52, %s54
      %p61 = scmp.eq.s32.totalorder %s23, 1
      %p62 = por %p60, %p61
      %p63 = scmp.ne.s32.totalorder %s54, %s55
      %p64 = scmp.eq.s32.totalorder %s23, 0
      %p65 = por %p63, %p64
      %p66 = scmp.ne.s32.totalorder %s54, %s55
      %p67 = scmp.eq.s32.totalorder %s24, 1
      %p68 = por %p66, %p67
      %p70 = scmp.ne.s32.totalorder %s55, %s69
      %p71 = scmp.eq.s32.totalorder %s24, 0
      %p72 = por %p70, %p71
      %s74 = sadd.s32 %s73, 1
      %p77 = scmp.eq.s32.totalorder %s18, 1
      %p78 = scmp.ne.s32.totalorder %s73, %s75
      %p79 = scmp.eq.s32.totalorder %s18, 0
      %p80 = por %p78, %p79
      %p81 = scmp.ne.s32.totalorder %s73, %s75
      %p82 = scmp.eq.s32.totalorder %s23, 1
      %p83 = por %p81, %p82
      %p84 = scmp.ne.s32.totalorder %s75, %s76
      %p85 = scmp.eq.s32.totalorder %s23, 0
      %p86 = por %p84, %p85
      %p87 = scmp.ne.s32.totalorder %s75, %s76
      %p88 = scmp.eq.s32.totalorder %s24, 1
      %p89 = por %p87, %p88
      %p91 = scmp.ne.s32.totalorder %s76, %s90
      %p92 = scmp.eq.s32.totalorder %s24, 0
      %p93 = por %p91, %p92
      %s95 = sadd.s32 %s94, 1
      %p98 = scmp.eq.s32.totalorder %s18, 1
      %p99 = scmp.ne.s32.totalorder %s94, %s96
      %p100 = scmp.eq.s32.totalorder %s18, 0
      %p101 = por %p99, %p100
      %p102 = scmp.ne.s32.totalorder %s94, %s96
      %p103 = scmp.eq.s32.totalorder %s23, 1
      %p104 = por %p102, %p103
      %p105 = scmp.ne.s32.totalorder %s96, %s97
      %p106 = scmp.eq.s32.totalorder %s23, 0
      %p107 = por %p105, %p106
      %p108 = scmp.ne.s32.totalorder %s96, %s97
      %p109 = scmp.eq.s32.totalorder %s24, 1
      %p110 = por %p108, %p109
      %p112 = scmp.ne.s32.totalorder %s97, %s111
      %p113 = scmp.eq.s32.totalorder %s24, 0
      %p114 = por %p112, %p113
      %s116 = sadd.s32 %s115, 1
      %p119 = scmp.eq.s32.totalorder %s18, 1
      %p120 = scmp.ne.s32.totalorder %s115, %s117
      %p121 = scmp.eq.s32.totalorder %s18, 0
      %p122 = por %p120, %p121
      %p123 = scmp.ne.s32.totalorder %s115, %s117
      %p124 = scmp.eq.s32.totalorder %s23, 1
      %p125 = por %p123, %p124
      %p126 = scmp.ne.s32.totalorder %s117, %s118
      %p127 = scmp.eq.s32.totalorder %s23, 0
      %p128 = por %p126, %p127
      %p129 = scmp.ne.s32.totalorder %s117, %s118
      %p130 = scmp.eq.s32.totalorder %s24, 1
      %p131 = por %p129, %p130
      %p133 = scmp.ne.s32.totalorder %s118, %s132
      %p134 = scmp.eq.s32.totalorder %s24, 0
      %p135 = por %p133, %p134
      %s136 = ssub.s32 %s18, %s25
      %p137 = scmp.eq.s32.totalorder %s136, 0
      %s139 = sadd.s32 %s138, 1
      %s140 = scalar_select %p137, %s138, %s139
      %p143 = pneg %p137
      %p144 = scmp.eq.s32.totalorder %s18, 1
      %p145 = por %p143, %p144
      %p146 = scmp.ne.s32.totalorder %s138, %s141
      %p147 = scmp.eq.s32.totalorder %s18, 0
      %p148 = por %p146, %p147
      %p149 = scmp.ne.s32.totalorder %s138, %s141
      %p150 = scmp.eq.s32.totalorder %s23, 1
      %p151 = por %p149, %p150
      %p152 = scmp.ne.s32.totalorder %s141, %s142
      %p153 = scmp.eq.s32.totalorder %s23, 0
      %p154 = por %p152, %p153
      %p155 = scmp.ne.s32.totalorder %s141, %s142
      %p156 = scmp.eq.s32.totalorder %s24, 1
      %p157 = por %p155, %p156
      %p159 = scmp.ne.s32.totalorder %s142, %s158
      %p160 = scmp.eq.s32.totalorder %s24, 0
      %p161 = por %p159, %p160
      %p162 = scmp.le.s32.totalorder 1, %s18
      %p163 = scmp.lt.s32.totalorder %s18, 3
      %p164 = pnand %p162, %p163
      %p165 = pneg %p164
      // Predicated region
      $region9: #{tpu_custom_call.1} parent=5 // pred_check
        _
      $region10: #{tpu_custom_call.1} parent=5 // pred_check_branch
        %167 = sbr.rel (%p164) target = $region12
      $region11: #{tpu_custom_call.1} parent=5 // pred_region
        %s168 = ssub.s32 %s18, 1
        // Predicated region
        $region13: #{tpu_custom_call.1} parent=11 // pred_check
          %p169 = pneg %p65
        $region14: #{tpu_custom_call.1} parent=11 // pred_check_branch
          %171 = sbr.rel (%p169) target = $region16
        $region15: #{tpu_custom_call.1} parent=11 // pred_region
          %s173 = ssub.s32 1024, 1024
          %174 = vsyncadd [#allocation6], %s173
          %s175 = sshll.u32 [#allocation5], 4
          %s176 = int_to_ptr.vmem [resolvable:$true] %s175
          %181 = dma.hbm_to_vmem [thread:$0]  %s1, 1024, %s176, [#allocation6], 64, 64, 4
        $region16: #{tpu_custom_call.1} parent=11 // pred_fallthru
          _
        // Predicated region
        $region17: #{tpu_custom_call.1} parent=11 // pred_check
          %p182 = pneg %p86
        $region18: #{tpu_custom_call.1} parent=11 // pred_check_branch
          %184 = sbr.rel (%p182) target = $region20
        $region19: #{tpu_custom_call.1} parent=11 // pred_region
          _
        $region20: #{tpu_custom_call.1} parent=11 // pred_fallthru
          _
        // Predicated region
        $region21: #{tpu_custom_call.1} parent=11 // pred_check
          %p185 = pneg %p107
        $region22: #{tpu_custom_call.1} parent=11 // pred_check_branch
          %187 = sbr.rel (%p185) target = $region24
        $region23: #{tpu_custom_call.1} parent=11 // pred_region
          %s189 = ssub.s32 1024, 1024
          %190 = vsyncadd [#allocation6], %s189
          %s191 = sshll.u32 [#allocation7], 4
          %s192 = int_to_ptr.vmem [resolvable:$true] %s191
          %197 = dma.hbm_to_vmem [thread:$0]  %s3, 1024, %s192, [#allocation6], 64, 64, 4
        $region24: #{tpu_custom_call.1} parent=11 // pred_fallthru
          _
        // Predicated region
        $region25: #{tpu_custom_call.1} parent=11 // pred_check
          %p198 = pneg %p128
        $region26: #{tpu_custom_call.1} parent=11 // pred_check_branch
          %200 = sbr.rel (%p198) target = $region28
        $region27: #{tpu_custom_call.1} parent=11 // pred_region
          _
        $region28: #{tpu_custom_call.1} parent=11 // pred_fallthru
          _
      $region12: #{tpu_custom_call.1} parent=5 // pred_fallthru
        _
      %p201 = scmp.lt.s32.totalorder %s18, 2
      // Predicated region
      $region29: #{tpu_custom_call.1} parent=5 // pred_check
        %p202 = pneg %p201
      $region30: #{tpu_custom_call.1} parent=5 // pred_check_branch
        %204 = sbr.rel (%p202) target = $region32
      $region31: #{tpu_custom_call.1} parent=5 // pred_region
        // Predicated region
        $region33: #{tpu_custom_call.1} parent=31 // pred_check
          %p205 = pneg %p38
        $region34: #{tpu_custom_call.1} parent=31 // pred_check_branch
          %207 = sbr.rel (%p205) target = $region36
        $region35: #{tpu_custom_call.1} parent=31 // pred_region
          %s208 = sand.u32 %s28, 1
          %s209 = scalar_lea.sflag [#allocation3], %s208
          %s210 = sand.u32 %s28, 1
          %s211 = smul.addr %s210, 8
          %s212 = scalar_lea.vmem [#allocation2], %s211
          %s213 = smul.u32 2, %s18
          %s215 = ssub.s32 128, 128
          %216 = vsyncadd %s209, %s215
          %s217 = smul.addr %s213, 64
          %s218 = scalar_lea.hbm %s0, %s217
          %s219 = sshll.u32 %s212, 4
          %s220 = int_to_ptr.vmem [resolvable:$true] %s219
          %225 = dma.hbm_to_vmem [thread:$0]  %s218, 128, %s220, %s209, 64, 64, 4
        $region36: #{tpu_custom_call.1} parent=31 // pred_fallthru
          _
      $region32: #{tpu_custom_call.1} parent=5 // pred_fallthru
        _
      %p226 = scmp.le.s32.totalorder 1, %s18
      %p227 = scmp.lt.s32.totalorder %s18, 3
      %p228 = pnand %p226, %p227
      %p229 = pneg %p228
      // Predicated region
      $region37: #{tpu_custom_call.1} parent=5 // pred_check
        _
      $region38: #{tpu_custom_call.1} parent=5 // pred_check_branch
        %231 = sbr.rel (%p228) target = $region40
      $region39: #{tpu_custom_call.1} parent=5 // pred_region
        %s232 = ssub.s32 %s18, 1
        %s233 = sand.u32 %s31, 1
        %s234 = scalar_lea.sflag [#allocation3], %s233
        %s235 = sand.u32 %s31, 1
        %s236 = smul.addr %s235, 8
        %s237 = scalar_lea.vmem [#allocation2], %s236
        // Predicated region
        $region41: #{tpu_custom_call.1} parent=39 // pred_check
          %p238 = pneg %p44
        $region42: #{tpu_custom_call.1} parent=39 // pred_check_branch
          %240 = sbr.rel (%p238) target = $region44
        $region43: #{tpu_custom_call.1} parent=39 // pred_region
          %241 = dma.done %s234, 128
        $region44: #{tpu_custom_call.1} parent=39 // pred_fallthru
          _
        // Predicated region
        $region45: #{tpu_custom_call.1} parent=39 // pred_check
          %p242 = pneg %p65
        $region46: #{tpu_custom_call.1} parent=39 // pred_check_branch
          %244 = sbr.rel (%p242) target = $region48
        $region47: #{tpu_custom_call.1} parent=39 // pred_region
          %245 = dma.done [#allocation6], 1024
        $region48: #{tpu_custom_call.1} parent=39 // pred_fallthru
          _
        // Predicated region
        $region49: #{tpu_custom_call.1} parent=39 // pred_check
          %p246 = pneg %p107
        $region50: #{tpu_custom_call.1} parent=39 // pred_check_branch
          %248 = sbr.rel (%p246) target = $region52
        $region51: #{tpu_custom_call.1} parent=39 // pred_region
          %249 = dma.done [#allocation6], 1024
        $region52: #{tpu_custom_call.1} parent=39 // pred_fallthru
          _
        %s250 = sand.u32 %s31, 1
        %s251 = scalar_lea.sflag [#allocation3], %s250
        %s252 = sand.u32 %s31, 1
        %s253 = smul.addr %s252, 8
        %s254 = scalar_lea.vmem [#allocation2], %s253
        %p255 = pneg %p44
        %p256 = pneg %p41
        %p257 = pneg %p65
        %p258 = pneg %p62
        %p259 = pneg %p86
        %p260 = pneg %p83
        %p261 = pneg %p107
        %p262 = pneg %p104
        %p263 = pneg %p128
        %p264 = pneg %p125
        %p265 = pneg %p154
        %p266 = pneg %p151
        %s267 = sand.u32 %s141, 1
        %s268 = scalar_lea.sflag [#allocation4], %s267
        %s269 = sand.u32 %s141, 1
        %s270 = smul.addr %s269, 16
        %s271 = scalar_lea.vmem [#allocation8], %s270
        %s272 = smul.u32 2, %s23
        %s273 = smul.u32 2, %s23
        %v275 = vld [vmem:[%s237] sm:$0xf]
        %v276 = vld [vmem:[%s237 + $0x4] sm:$0xf]
        %v277 = vld [vmem:[#allocation5] sm:$0xf]
        %v278 = vld [vmem:[#allocation5 + $0x4] sm:$0xf]
        %v279 = vld [vmem:[#allocation5 + $0x8] sm:$0xf]
        %v280 = vld [vmem:[#allocation5 + $0xc] sm:$0xf]
        %v281 = vld [vmem:[#allocation5 + $0x10] sm:$0xf]
        %v282 = vld [vmem:[#allocation5 + $0x14] sm:$0xf]
        %v283 = vld [vmem:[#allocation5 + $0x18] sm:$0xf]
        %v284 = vld [vmem:[#allocation5 + $0x1c] sm:$0xf]
        %v285 = vld [vmem:[#allocation5 + $0x20] sm:$0xf]
        %v286 = vld [vmem:[#allocation5 + $0x24] sm:$0xf]
        %v287 = vld [vmem:[#allocation5 + $0x28] sm:$0xf]
        %v288 = vld [vmem:[#allocation5 + $0x2c] sm:$0xf]
        %v289 = vld [vmem:[#allocation5 + $0x30] sm:$0xf]
        %v290 = vld [vmem:[#allocation5 + $0x34] sm:$0xf]
        %v291 = vld [vmem:[#allocation5 + $0x38] sm:$0xf]
        %v292 = vld [vmem:[#allocation5 + $0x3c] sm:$0xf]
        %v293 = vld [vmem:[%s2] sm:$0x1]
        %v295 = vlaneseq
        %v296 = vshrl.u32 %v295, 7
        %v297 = vsub.s32 0, %v296
        %v298 = vrot.slane %v293, %v297
        %v302 = vunpack.c.l.b16 %v275
        %v303 = vunpack.c.l.b16 %v276
        %v304 = vpack.c.b16 %v303, %v302
        %v322 = vunpack.c.l.b16 %v277
        %v323 = vunpack.c.l.b16 %v278
        %v324 = vunpack.c.l.b16 %v279
        %v325 = vunpack.c.l.b16 %v280
        %v326 = vunpack.c.l.b16 %v281
        %v327 = vunpack.c.l.b16 %v282
        %v328 = vunpack.c.l.b16 %v283
        %v329 = vunpack.c.l.b16 %v284
        %v330 = vunpack.c.l.b16 %v285
        %v331 = vunpack.c.l.b16 %v286
        %v332 = vunpack.c.l.b16 %v287
        %v333 = vunpack.c.l.b16 %v288
        %v334 = vunpack.c.l.b16 %v289
        %v335 = vunpack.c.l.b16 %v290
        %v336 = vunpack.c.l.b16 %v291
        %v337 = vunpack.c.l.b16 %v292
        %v338 = vpack.c.b16 %v323, %v322
        %v339 = vpack.c.b16 %v325, %v324
        %v340 = vpack.c.b16 %v327, %v326
        %v341 = vpack.c.b16 %v329, %v328
        %v342 = vpack.c.b16 %v331, %v330
        %v343 = vpack.c.b16 %v333, %v332
        %v344 = vpack.c.b16 %v335, %v334
        %v345 = vpack.c.b16 %v337, %v336
        %354 = vmatprep.subr.bf16.mxu0 0
        %355 = vmatpush1.bf16.msra.mxu0 %v338
        %356 = vmatprep.subr.bf16.mxu0 0
        %357 = vmatpush1.bf16.msra.mxu0 %v339
        %358 = vmatprep.subr.bf16.mxu0 0
        %359 = vmatpush1.bf16.msra.mxu0 %v340
        %360 = vmatprep.subr.bf16.mxu0 0
        %361 = vmatpush1.bf16.msra.mxu0 %v341
        %362 = vmatprep.subr.bf16.mxu0 0
        %363 = vmatpush1.bf16.msra.mxu0 %v342
        %364 = vmatprep.subr.bf16.mxu0 0
        %365 = vmatpush1.bf16.msra.mxu0 %v343
        %366 = vmatprep.subr.bf16.mxu0 0
        %367 = vmatpush1.bf16.msra.mxu0 %v344
        %368 = vmatprep.subr.bf16.mxu0 0
        %369 = vmatpush1.bf16.msra.mxu0 %v345
        %370 = vmatprep.subr.bf16.mxu0 0
        %371 = vmatpush1.bf16.msra.mxu0 0
        %372 = vmatprep.subr.bf16.mxu0 0
        %373 = vmatpush1.bf16.msra.mxu0 0
        %374 = vmatprep.subr.bf16.mxu0 0
        %375 = vmatpush1.bf16.msra.mxu0 0
        %376 = vmatprep.subr.bf16.mxu0 0
        %377 = vmatpush1.bf16.msra.mxu0 0
        %378 = vmatprep.subr.bf16.mxu0 0
        %379 = vmatpush1.bf16.msra.mxu0 0
        %380 = vmatprep.subr.bf16.mxu0 0
        %381 = vmatpush1.bf16.msra.mxu0 0
        %382 = vmatprep.subr.bf16.mxu0 0
        %383 = vmatpush1.bf16.msra.mxu0 0
        %384 = vmatprep.subr.bf16.mxu0 0
        %385 = vmatpush1.bf16.msra.mxu0 0
        %386 = vmatprep.mubr.bf16.mxu0 0
        %387 = vmatmul.mubr.bf16.gmra.mrb[0].mxu0 %v304
        %v388 = vpop.f32.mrb[0].mxu0
        %v389 = vadd.f32 %v298, %v388
        %v390 = vpop.f32.mrb[0].mxu0
        %v391 = vpop.f32.mrb[0].mxu0
        %v392 = vadd.f32 %v298, %v391
        %v393 = vpop.f32.mrb[0].mxu0
        %394 = vdwg.mxu0
        %v395 = vmax.f32 %v389, 0.0
        %v396 = vmax.f32 %v392, 0.0
        %v397 = vpack.c.bf16 %v396, %v395
        %v398 = vld [vmem:[#allocation7] sm:$0xf]
        %v399 = vld [vmem:[#allocation7 + $0x4] sm:$0xf]
        %v400 = vld [vmem:[#allocation7 + $0x8] sm:$0xf]
        %v401 = vld [vmem:[#allocation7 + $0xc] sm:$0xf]
        %v402 = vld [vmem:[#allocation7 + $0x10] sm:$0xf]
        %v403 = vld [vmem:[#allocation7 + $0x14] sm:$0xf]
        %v404 = vld [vmem:[#allocation7 + $0x18] sm:$0xf]
        %v405 = vld [vmem:[#allocation7 + $0x1c] sm:$0xf]
        %v406 = vld [vmem:[#allocation7 + $0x20] sm:$0xf]
        %v407 = vld [vmem:[#allocation7 + $0x24] sm:$0xf]
        %v408 = vld [vmem:[#allocation7 + $0x28] sm:$0xf]
        %v409 = vld [vmem:[#allocation7 + $0x2c] sm:$0xf]
        %v410 = vld [vmem:[#allocation7 + $0x30] sm:$0xf]
        %v411 = vld [vmem:[#allocation7 + $0x34] sm:$0xf]
        %v412 = vld [vmem:[#allocation7 + $0x38] sm:$0xf]
        %v413 = vld [vmem:[#allocation7 + $0x3c] sm:$0xf]
        %v414 = vld [vmem:[%s4] sm:$0x1]
        %v416 = vlaneseq
        %v417 = vshrl.u32 %v416, 7
        %v418 = vsub.s32 0, %v417
        %v419 = vrot.slane %v414, %v418
        %v437 = vunpack.c.l.b16 %v398
        %v438 = vunpack.c.l.b16 %v399
        %v439 = vunpack.c.l.b16 %v400
        %v440 = vunpack.c.l.b16 %v401
        %v441 = vunpack.c.l.b16 %v402
        %v442 = vunpack.c.l.b16 %v403
        %v443 = vunpack.c.l.b16 %v404
        %v444 = vunpack.c.l.b16 %v405
        %v445 = vunpack.c.l.b16 %v406
        %v446 = vunpack.c.l.b16 %v407
        %v447 = vunpack.c.l.b16 %v408
        %v448 = vunpack.c.l.b16 %v409
        %v449 = vunpack.c.l.b16 %v410
        %v450 = vunpack.c.l.b16 %v411
        %v451 = vunpack.c.l.b16 %v412
        %v452 = vunpack.c.l.b16 %v413
        %v453 = vpack.c.b16 %v438, %v437
        %v454 = vpack.c.b16 %v440, %v439
        %v455 = vpack.c.b16 %v442, %v441
        %v456 = vpack.c.b16 %v444, %v443
        %v457 = vpack.c.b16 %v446, %v445
        %v458 = vpack.c.b16 %v448, %v447
        %v459 = vpack.c.b16 %v450, %v449
        %v460 = vpack.c.b16 %v452, %v451
        %469 = vmatprep.subr.bf16.mxu0 0
        %470 = vmatpush1.bf16.msra.mxu0 %v453
        %471 = vmatprep.subr.bf16.mxu0 0
        %472 = vmatpush1.bf16.msra.mxu0 %v454
        %473 = vmatprep.subr.bf16.mxu0 0
        %474 = vmatpush1.bf16.msra.mxu0 %v455
        %475 = vmatprep.subr.bf16.mxu0 0
        %476 = vmatpush1.bf16.msra.mxu0 %v456
        %477 = vmatprep.subr.bf16.mxu0 0
        %478 = vmatpush1.bf16.msra.mxu0 %v457
        %479 = vmatprep.subr.bf16.mxu0 0
        %480 = vmatpush1.bf16.msra.mxu0 %v458
        %481 = vmatprep.subr.bf16.mxu0 0
        %482 = vmatpush1.bf16.msra.mxu0 %v459
        %483 = vmatprep.subr.bf16.mxu0 0
        %484 = vmatpush1.bf16.msra.mxu0 %v460
        %485 = vmatprep.subr.bf16.mxu0 0
        %486 = vmatpush1.bf16.msra.mxu0 0
        %487 = vmatprep.subr.bf16.mxu0 0
        %488 = vmatpush1.bf16.msra.mxu0 0
        %489 = vmatprep.subr.bf16.mxu0 0
        %490 = vmatpush1.bf16.msra.mxu0 0
        %491 = vmatprep.subr.bf16.mxu0 0
        %492 = vmatpush1.bf16.msra.mxu0 0
        %493 = vmatprep.subr.bf16.mxu0 0
        %494 = vmatpush1.bf16.msra.mxu0 0
        %495 = vmatprep.subr.bf16.mxu0 0
        %496 = vmatpush1.bf16.msra.mxu0 0
        %497 = vmatprep.subr.bf16.mxu0 0
        %498 = vmatpush1.bf16.msra.mxu0 0
        %499 = vmatprep.subr.bf16.mxu0 0
        %500 = vmatpush1.bf16.msra.mxu0 0
        %501 = vmatprep.mubr.bf16.mxu0 0
        %502 = vmatmul.mubr.bf16.gmra.mrb[0].mxu0 %v397
        %v503 = vpop.f32.mrb[0].mxu0
        %v504 = vadd.f32 %v419, %v503
        %v505 = vpop.f32.mrb[0].mxu0
        %v506 = vpop.f32.mrb[0].mxu0
        %v507 = vadd.f32 %v419, %v506
        %v508 = vpop.f32.mrb[0].mxu0
        %509 = vdwg.mxu0
        %510 = vmax.xlane.f32.xlu0 %v504
        %v511 = vpop.xlane.xlu0 %510
        %512 = vmax.xlane.f32.xlu0 %v507
        %v513 = vpop.xlane.xlu0 %512
        %v514 = vsub.f32 %v504, %v511
        %v515 = vsub.f32 %v507, %v513
        %v516 = vmul.f32 %v514, 1.442695
        %v517 = vpow.pop %v516
        %v518 = vmul.f32 %v515, 1.442695
        %v519 = vpow.pop %v518
        %520 = vadd.xlane.f32.xlu0 %v517
        %v521 = vpop.xlane.xlu0 %520
        %522 = vadd.xlane.f32.xlu0 %v519
        %v523 = vpop.xlane.xlu0 %522
        %v524 = vrcp.pop %v521
        %v525 = vrcp.pop %v523
        %v526 = vmul.f32 %v517, %v524
        %v527 = vmul.f32 %v519, %v525
        %v528 = vpack.c.bf16 %v507, %v504
        %v530 = vunpack.c.l.b16 %v528
        %v531 = vunpack.c.h.b16 %v528
        %v532 = vpack.c.b16 %v530, %v530
        %v533 = vpack.c.b16 %v531, %v531
        %536 = vst [vmem:[%s271] sm:$0xf] %v532
        %537 = vst [vmem:[%s271 + $0x8] sm:$0xf] %v533
        %v538 = vpack.c.bf16 %v527, %v526
        %v540 = vunpack.c.l.b16 %v538
        %v541 = vunpack.c.h.b16 %v538
        %v542 = vpack.c.b16 %v540, %v540
        %v543 = vpack.c.b16 %v541, %v541
        %546 = vst [vmem:[%s271 + $0x4] sm:$0xf] %v542
        %547 = vst [vmem:[%s271 + $0xc] sm:$0xf] %v543
        %s548 = sand.u32 %s141, 1
        %s549 = scalar_lea.sflag [#allocation4], %s548
        %s550 = sand.u32 %s141, 1
        %s551 = smul.addr %s550, 16
        %s552 = scalar_lea.vmem [#allocation8], %s551
        // Predicated region
        $region53: #{tpu_custom_call.1} parent=39 // pred_check
          %p553 = pneg %p151
        $region54: #{tpu_custom_call.1} parent=39 // pred_check_branch
          %555 = sbr.rel (%p553) target = $region56
        $region55: #{tpu_custom_call.1} parent=39 // pred_region
          %s556 = smul.u32 2, %s23
          %s558 = ssub.s32 256, 256
          %559 = vsyncadd %s549, %s558
          %s560 = smul.addr %s556, 2
          %s561 = smul.addr %s560, 64
          %s562 = scalar_lea.hbm %s5, %s561
          %s563 = sshll.u32 %s552, 4
          %s564 = int_to_ptr.vmem [resolvable:$true] %s563
          %569 = dma.vmem_to_hbm [thread:$0]  %s564, 256, %s562, %s549, 128, 128, 8
        $region56: #{tpu_custom_call.1} parent=39 // pred_fallthru
          _
      $region40: #{tpu_custom_call.1} parent=5 // pred_fallthru
        _
      %p570 = scmp.le.s32.totalorder 2, %s18
      // Predicated region
      $region57: #{tpu_custom_call.1} parent=5 // pred_check
        %p571 = pneg %p570
      $region58: #{tpu_custom_call.1} parent=5 // pred_check_branch
        %573 = sbr.rel (%p571) target = $region60
      $region59: #{tpu_custom_call.1} parent=5 // pred_region
        %s574 = ssub.s32 %s18, 2
        // Predicated region
        $region61: #{tpu_custom_call.1} parent=59 // pred_check
          %p575 = pneg %p157
        $region62: #{tpu_custom_call.1} parent=59 // pred_check_branch
          %577 = sbr.rel (%p575) target = $region64
        $region63: #{tpu_custom_call.1} parent=59 // pred_region
          %s578 = sand.u32 %s142, 1
          %s579 = scalar_lea.sflag [#allocation4], %s578
          %s580 = sand.u32 %s142, 1
          %s581 = smul.addr %s580, 16
          %s582 = scalar_lea.vmem [#allocation8], %s581
          %583 = dma.done %s579, 256
        $region64: #{tpu_custom_call.1} parent=59 // pred_fallthru
          _
      $region60: #{tpu_custom_call.1} parent=5 // pred_fallthru
        _
    $region6: #{tpu_custom_call.1} parent=1 // loop_footer
      %s22 = sadd.s32 1, %s18
    $region7: #{tpu_custom_call.1} parent=1 // loop_footer_branch
      %17 = sbr.rel target = $region3
    $region8: #{tpu_custom_call.1} parent=1 // loop_exit
      _
    %584 = vsyncpa [#allocation3], 1
    %s585 = scalar_lea.sflag [#allocation3], 1
    %586 = vsyncpa %s585, 1
    %587 = vsyncpa [#allocation6], 1
    %588 = vsyncpa [#allocation4], 1
    %s589 = scalar_lea.sflag [#allocation4], 1
    %590 = vsyncpa %s589, 1

</llo_original>
